<compile_context>
chip_gen: v5e
topology: v5e:2x2
jax: 0.10.0
libtpu: 0.0.40
codegen_flags: <defaults>
</compile_context>

<pallas_src>
import functools

import jax
import jax.numpy as jnp
from jax.experimental import pallas as pl
from jax.experimental.pallas import tpu as pltpu


def _tpu_vmem_capacity_bytes():
    """Best-effort physical VMEM query; falls back to the v7x floor (64 MiB)."""
    try:
        info = pltpu.get_tpu_info()
        for attr in ("vmem_capacity_bytes", "vmem_bytes", "vmem_size_bytes"):
            v = getattr(info, attr, None)
            if isinstance(v, int) and v > 0:
                return v
    except Exception:
        pass
    try:
        kind = (jax.devices()[0].device_kind or "").lower()
        if "v5" in kind or "v6" in kind:
            return 128 * 1024 * 1024
    except Exception:
        pass
    return 64 * 1024 * 1024


def _focal_loss_kernel(logits_ref, labels_ref, *rest, gamma, batch_size, has_alpha):
    if has_alpha:
        alpha_ref, out_ref, acc_ref = rest
    else:
        out_ref, acc_ref = rest
        alpha_ref = None

    c = pl.program_id(0)          # megacore ("parallel") axis
    i = pl.program_id(1)          # batch reduction ("arbitrary") axis
    nsteps = pl.num_programs(1)

    # --- init the per-core resident [TB,1] accumulator on its first step ---
    @pl.when(i == 0)
    def _init():
        acc_ref[...] = jnp.zeros_like(acc_ref)

    x = logits_ref[...].astype(jnp.float32)            # [TB, C] native -> f32
    labels = labels_ref[...]                            # [TB, 1] int32
    TB, C = x.shape

    # --- numerically stable per-row log-sum-exp ---
    m = jnp.max(x, axis=-1, keepdims=True)              # [TB, 1]
    lse = m + jnp.log(jnp.sum(jnp.exp(x - m), axis=-1, keepdims=True))

    # --- fused gather: (1,C) lane-iota broadcast-compared against labels.
    #     No onehot f32 convert, no per-element alpha multiply: the label logit
    #     (and label alpha) are each one select + one lane reduce; the combine
    #     happens on [TB,1] vectors.
    class_row = jax.lax.broadcasted_iota(jnp.int32, (1, C), dimension=1)
    match = class_row == labels                          # [TB, C] bool (broadcast)
    x_lab = jnp.sum(jnp.where(match, x, 0.0), axis=-1, keepdims=True)   # x[label]
    ce = lse - x_lab                                     # unweighted NLL [TB, 1]
    if has_alpha:
        a_row = alpha_ref[...].astype(jnp.float32)       # [1, C]
        a_lab = jnp.sum(jnp.where(match, a_row, 0.0), axis=-1, keepdims=True)
        ce = a_lab * ce

    # --- focal modulation ---
    pt = jnp.exp(-ce)                                    # [TB, 1] (EUP)
    omp = 1.0 - pt
    g = float(gamma)
    if g == int(g) and 0.0 <= g <= 8.0:
        # integer gamma: explicit VALU multiplies (no EUP exp/log pair)
        n = int(g)
        if n == 0:
            mod = jnp.ones_like(omp)
        else:
            mod = omp
            for _ in range(n - 1):
                mod = mod * omp
    else:
        # clamp: 1 - exp(-ce) can round to a tiny negative -> NaN in power
        mod = jnp.power(jnp.maximum(omp, 0.0), g)
    focal = mod * ce                                     # [TB, 1]

    # --- mask ragged / clamped-duplicate rows; accumulate into VMEM scratch ---
    row_ids = jax.lax.broadcasted_iota(jnp.int32, (TB, 1), dimension=0)
    start = (c * nsteps + i) * TB
    valid = (start + row_ids) < batch_size
    acc_ref[...] += jnp.where(valid, focal, 0.0)

    # --- single cross-sublane reduce + lane-dense (8,128) store per core pass ---
    @pl.when(i == nsteps - 1)
    def _finalize():
        out_ref[...] = jnp.zeros_like(out_ref) + jnp.sum(acc_ref[...])


def focal_loss(logits, labels, *, gamma=2.0, alpha=None, block_rows=None,
               num_cores=2):
    """Pallas TPU implementation of FocalLoss.forward.

    logits: [B, C] float (f32 or bf16 — ingested in native dtype)
    labels: [B] int
    alpha:  optional [C] float class weights
    Returns a scalar float32 (mean focal loss over the batch).
    """
    B, C = logits.shape
    labels2d = labels.astype(jnp.int32).reshape(B, 1)
    has_alpha = alpha is not None
    itemsize = jnp.dtype(logits.dtype).itemsize
    sub = 16 if itemsize == 2 else 8                 # dtype-aware sublane align

    # --- generation-aware VMEM budget ---
    vmem_phys = _tpu_vmem_capacity_bytes()
    vmem_limit = (64 * 1024 * 1024 if vmem_phys >= 128 * 1024 * 1024
                  else 32 * 1024 * 1024)
    budget = vmem_limit - 8 * 1024 * 1024

    # per-row footprint: double-buffered native logits + labels + ~4 f32
    # (TB,C) working arrays (cast + temporaries) + the f32 accumulator column.
    per_row = 2 * C * itemsize + 2 * 4 + 4 * C * 4 + 4
    if block_rows is None:
        block_rows = max(sub, budget // per_row)
    TB = int(min(int(block_rows), 32768, B))
    TB = max(TB, 1)
    if TB < B:
        TB = max(sub, (TB // sub) * sub)

    if TB * per_row > budget:
        # Large-C fallback: raise the compiler limit toward physical VMEM.
        needed = TB * per_row + 8 * 1024 * 1024
        if needed > vmem_phys - 8 * 1024 * 1024:
            # TODO(synk): class-axis online-logsumexp path for vocab-scale C.
            raise NotImplementedError(
                f"FocalLoss kernel: C={C} too large for a single VMEM tile.")
        vmem_limit = needed

    n_blocks = -(-B // TB)
    num_cores = max(1, min(int(num_cores), n_blocks))
    steps_per_core = -(-n_blocks // num_cores)
    last_block = n_blocks - 1

    def _blk(c, i):
        # Clamp so padded steps of the last core re-read a valid block;
        # their rows are masked out in-kernel (contribute 0).
        return jnp.minimum(c * steps_per_core + i, last_block)

    in_specs = [
        pl.BlockSpec((TB, C), lambda c, i: (_blk(c, i), 0)),
        pl.BlockSpec((TB, 1), lambda c, i: (_blk(c, i), 0)),
    ]
    args = [logits, labels2d]
    if has_alpha:
        alpha_arr = jnp.asarray(alpha, dtype=jnp.float32).reshape(1, C)
        in_specs.append(pl.BlockSpec((1, C), lambda c, i: (0, 0)))
        args.append(alpha_arr)

    out = pl.pallas_call(
        functools.partial(_focal_loss_kernel, gamma=float(gamma),
                          batch_size=B, has_alpha=has_alpha),
        out_shape=jax.ShapeDtypeStruct((num_cores, 8, 128), jnp.float32),
        grid=(num_cores, steps_per_core),
        in_specs=in_specs,
        out_specs=pl.BlockSpec((1, 8, 128), lambda c, i: (c, 0, 0)),
        scratch_shapes=[pltpu.VMEM((TB, 1), jnp.float32)],
        compiler_params=pltpu.CompilerParams(
            dimension_semantics=("parallel", "arbitrary"),
            vmem_limit_bytes=int(vmem_limit),
        ),
        cost_estimate=pl.CostEstimate(
            flops=8 * B * C,
            transcendentals=B * C + 3 * B,
            bytes_accessed=(B * C * itemsize + 4 * B
                            + (4 * C if has_alpha else 0)
                            + num_cores * 8 * 128 * 4),
        ),
    )(*args)

    # tiny cross-core combine + mean in the wrapper
    return jnp.sum(out[:, 0, 0]) / jnp.float32(B)


def _reference_focal_loss(logits, labels, gamma=2.0, alpha=None):
    """Pure-JAX reference mirroring the PyTorch module exactly."""
    logp = jax.nn.log_softmax(logits.astype(jnp.float32), axis=-1)
    nll = -jnp.take_along_axis(logp, labels[:, None], axis=-1)[:, 0]
    if alpha is not None:
        w = jnp.asarray(alpha, jnp.float32)[labels]
        ce = w * nll
    else:
        ce = nll
    pt = jnp.exp(-ce)
    return jnp.mean((1.0 - pt) ** gamma * ce)


if __name__ == "__main__":
    key = jax.random.PRNGKey(0)
    k1, k2, k3, k4 = jax.random.split(key, 4)

    # --- Case 1: small, single tile, alpha=None (default module config) ---
    B, C = 8, 16
    logits = jax.random.normal(k1, (B, C), dtype=jnp.float32)
    labels = jax.random.randint(k2, (B,), 0, C, dtype=jnp.int32)
    out_none = jax.block_until_ready(focal_loss(logits, labels, gamma=2.0, alpha=None))
    ref_none = _reference_focal_loss(logits, labels, gamma=2.0, alpha=None)
    assert jnp.allclose(out_none, ref_none, atol=1e-5, rtol=1e-5), (out_none, ref_none)

    # --- Case 2: with class-weight alpha ---
    alpha = jnp.linspace(0.5, 1.5, C, dtype=jnp.float32)
    out_alpha = jax.block_until_ready(focal_loss(logits, labels, gamma=2.0, alpha=alpha))
    ref_alpha = _reference_focal_loss(logits, labels, gamma=2.0, alpha=alpha)
    assert jnp.allclose(out_alpha, ref_alpha, atol=1e-5, rtol=1e-5), (out_alpha, ref_alpha)

    # --- Case 3: tiled + ragged batch (accumulator, masking, 2-core split) ---
    B2 = 40
    logits2 = jax.random.normal(k3, (B2, C), dtype=jnp.float32)
    labels2 = jax.random.randint(k4, (B2,), 0, C, dtype=jnp.int32)
    out_tiled = jax.block_until_ready(
        focal_loss(logits2, labels2, gamma=2.0, alpha=alpha, block_rows=16))
    ref_tiled = _reference_focal_loss(logits2, labels2, gamma=2.0, alpha=alpha)
    assert jnp.allclose(out_tiled, ref_tiled, atol=1e-5, rtol=1e-5), (out_tiled, ref_tiled)

    # --- Case 4: bf16 logits ingested natively + non-integer gamma path ---
    logits_bf16 = logits2.astype(jnp.bfloat16)
    out_bf16 = jax.block_until_ready(
        focal_loss(logits_bf16, labels2, gamma=1.5, alpha=None, block_rows=16))
    ref_bf16 = _reference_focal_loss(logits_bf16, labels2, gamma=1.5, alpha=None)
    assert jnp.allclose(out_bf16, ref_bf16, atol=1e-4, rtol=1e-4), (out_bf16, ref_bf16)

    print("KERNEL_OK")
</pallas_src>

<mosaic_0001>
module attributes {stable_mosaic.version = 11 : i64} {
  func.func @_focal_loss_kernel(%arg0: i32, %arg1: i32, %arg2: memref<8x16xf32, #tpu.memory_space<vmem>>, %arg3: memref<8x1xi32, #tpu.memory_space<vmem>>, %arg4: memref<1x8x128xf32, #tpu.memory_space<vmem>>, %arg5: memref<8x1xf32, #tpu.memory_space<vmem>>) attributes {dimension_semantics = [#tpu.dimension_semantics<parallel>, #tpu.dimension_semantics<arbitrary>], iteration_bounds = array<i64: 1, 1>, scalar_prefetch = 0 : i64, scratch_operands = 1 : i64, tpu.core_type = #tpu.core_type<tc>, window_params = [{transform_indices = @transform_0, window_bounds = array<i64: 8, 16>}, {transform_indices = @transform_1, window_bounds = array<i64: 8, 1>}, {transform_indices = @transform_2, window_bounds = array<i64: 1, 8, 128>}]} {
    %c0_i32 = arith.constant 0 : i32
    %0 = arith.cmpi eq, %arg1, %c0_i32 : i32
    %1 = arith.extui %0 : i1 to i32
    %c0_i32_0 = arith.constant 0 : i32
    %2 = arith.cmpi ne, %1, %c0_i32_0 : i32
    scf.if %2 {
      %cst_17 = arith.constant 0.000000e+00 : f32
      %46 = vector.broadcast %cst_17 : f32 to vector<8x1xf32>
      %c0_18 = arith.constant 0 : index
      %c0_19 = arith.constant 0 : index
      %47 = vector.load %arg5[%c0_18, %c0_19] : memref<8x1xf32, #tpu.memory_space<vmem>>, vector<8x1xf32>
      tpu.vector_store %arg5[%c0_18, %c0_19], %46 {strides = array<i32>} : memref<8x1xf32, #tpu.memory_space<vmem>>, vector<8x1xf32>,
    } else {
    }
    %c0 = arith.constant 0 : index
    %c0_1 = arith.constant 0 : index
    %3 = vector.load %arg2[%c0, %c0_1] : memref<8x16xf32, #tpu.memory_space<vmem>>, vector<8x16xf32>
    %c0_2 = arith.constant 0 : index
    %c0_3 = arith.constant 0 : index
    %4 = vector.load %arg3[%c0_2, %c0_3] : memref<8x1xi32, #tpu.memory_space<vmem>>, vector<8x1xi32>
    %cst = arith.constant dense<0xFF800000> : vector<8xf32>
    %5 = vector.multi_reduction <maximumf>, %3, %cst [1] : vector<8x16xf32> to vector<8xf32>
    %6 = vector.shape_cast %5 : vector<8xf32> to vector<8x1xf32>
    %7 = vector.broadcast %6 : vector<8x1xf32> to vector<8x16xf32>
    %8 = arith.subf %3, %7 : vector<8x16xf32>
    %9 = math.exp %8 : vector<8x16xf32>
    %cst_4 = arith.constant dense<0.000000e+00> : vector<8xf32>
    %10 = vector.multi_reduction <add>, %9, %cst_4 [1] : vector<8x16xf32> to vector<8xf32>
    %11 = vector.shape_cast %10 : vector<8xf32> to vector<8x1xf32>
    %12 = math.log %11 : vector<8x1xf32>
    %13 = arith.addf %6, %12 : vector<8x1xf32>
    %14 = tpu.iota {dimensions = array<i32: 1>} : vector<1x16xi32>
    %15 = vector.broadcast %14 : vector<1x16xi32> to vector<8x16xi32>
    %16 = vector.broadcast %4 : vector<8x1xi32> to vector<8x16xi32>
    %17 = arith.cmpi eq, %15, %16 : vector<8x16xi32>
    %cst_5 = arith.constant 0.000000e+00 : f32
    %18 = vector.broadcast %cst_5 : f32 to vector<8x16xf32>
    %19 = arith.select %17, %3, %18 : vector<8x16xi1>, vector<8x16xf32>
    %cst_6 = arith.constant dense<0.000000e+00> : vector<8xf32>
    %20 = vector.multi_reduction <add>, %19, %cst_6 [1] : vector<8x16xf32> to vector<8xf32>
    %21 = vector.shape_cast %20 : vector<8xf32> to vector<8x1xf32>
    %22 = arith.subf %13, %21 : vector<8x1xf32>
    %cst_7 = arith.constant 0.000000e+00 : f32
    %23 = vector.broadcast %cst_7 : f32 to vector<8x1xf32>
    %24 = arith.subf %23, %22 : vector<8x1xf32>
    %25 = math.exp %24 : vector<8x1xf32>
    %cst_8 = arith.constant 1.000000e+00 : f32
    %26 = vector.broadcast %cst_8 : f32 to vector<8x1xf32>
    %27 = arith.subf %26, %25 : vector<8x1xf32>
    %28 = arith.mulf %27, %27 : vector<8x1xf32>
    %29 = arith.mulf %28, %22 : vector<8x1xf32>
    %30 = tpu.iota {dimensions = array<i32: 0>} : vector<8x1xi32>
    %c1_i32 = arith.constant 1 : i32
    %31 = arith.muli %arg0, %c1_i32 : i32
    %32 = arith.addi %31, %arg1 : i32
    %c8_i32 = arith.constant 8 : i32
    %33 = arith.muli %32, %c8_i32 : i32
    %34 = vector.broadcast %33 : i32 to vector<8x1xi32>
    %35 = arith.addi %34, %30 : vector<8x1xi32>
    %c8_i32_9 = arith.constant 8 : i32
    %36 = vector.broadcast %c8_i32_9 : i32 to vector<8x1xi32>
    %37 = arith.cmpi slt, %35, %36 : vector<8x1xi32>
    %c0_10 = arith.constant 0 : index
    %c0_11 = arith.constant 0 : index
    %38 = vector.load %arg5[%c0_10, %c0_11] : memref<8x1xf32, #tpu.memory_space<vmem>>, vector<8x1xf32>
    %cst_12 = arith.constant 0.000000e+00 : f32
    %39 = vector.broadcast %cst_12 : f32 to vector<8x1xf32>
    %40 = arith.select %37, %29, %39 : vector<8x1xi1>, vector<8x1xf32>
    %41 = arith.addf %38, %40 : vector<8x1xf32>
    %c0_13 = arith.constant 0 : index
    %c0_14 = arith.constant 0 : index
    %42 = vector.load %arg5[%c0_13, %c0_14] : memref<8x1xf32, #tpu.memory_space<vmem>>, vector<8x1xf32>
    tpu.vector_store %arg5[%c0_13, %c0_14], %41 {strides = array<i32>} : memref<8x1xf32, #tpu.memory_space<vmem>>, vector<8x1xf32>,
    %c0_i32_15 = arith.constant 0 : i32
    %43 = arith.cmpi eq, %arg1, %c0_i32_15 : i32
    %44 = arith.extui %43 : i1 to i32
    %c0_i32_16 = arith.constant 0 : i32
    %45 = arith.cmpi ne, %44, %c0_i32_16 : i32
    scf.if %45 {
      %cst_17 = arith.constant 0.000000e+00 : f32
      %46 = vector.broadcast %cst_17 : f32 to vector<1x8x128xf32>
      %c0_18 = arith.constant 0 : index
      %c0_19 = arith.constant 0 : index
      %47 = vector.load %arg5[%c0_18, %c0_19] : memref<8x1xf32, #tpu.memory_space<vmem>>, vector<8x1xf32>
      %48 = vector.shape_cast %47 : vector<8x1xf32> to vector<1x8x1xf32>
      %cst_20 = arith.constant dense<0.000000e+00> : vector<1xf32>
      %49 = vector.multi_reduction <add>, %48, %cst_20 [1, 2] : vector<1x8x1xf32> to vector<1xf32>
      %50 = vector.shape_cast %49 : vector<1xf32> to vector<1x1x1xf32>
      %51 = vector.extract %50[0, 0, 0] : f32 from vector<1x1x1xf32>
      %52 = vector.broadcast %51 : f32 to vector<1x8x128xf32>
      %53 = arith.addf %46, %52 : vector<1x8x128xf32>
      %c0_21 = arith.constant 0 : index
      %c0_22 = arith.constant 0 : index
      %c0_23 = arith.constant 0 : index
      %54 = vector.load %arg4[%c0_21, %c0_22, %c0_23] : memref<1x8x128xf32, #tpu.memory_space<vmem>>, vector<1x8x128xf32>
      tpu.vector_store %arg4[%c0_21, %c0_22, %c0_23], %53 {strides = array<i32>} : memref<1x8x128xf32, #tpu.memory_space<vmem>>, vector<1x8x128xf32>,
    } else {
    }
    return
  }
  func.func @transform_0(%arg0: i32, %arg1: i32) -> (i32, i32) {
    %c1_i32 = arith.constant 1 : i32
    %0 = arith.muli %arg0, %c1_i32 : i32
    %1 = arith.addi %0, %arg1 : i32
    %c0_i32 = arith.constant 0 : i32
    %2 = arith.minsi %1, %c0_i32 : i32
    %c0_i32_0 = arith.constant 0 : i32
    %c0_i32_1 = arith.constant 0 : i32
    return %2, %c0_i32_0 : i32, i32
  }
  func.func @transform_1(%arg0: i32, %arg1: i32) -> (i32, i32) {
    %c1_i32 = arith.constant 1 : i32
    %0 = arith.muli %arg0, %c1_i32 : i32
    %1 = arith.addi %0, %arg1 : i32
    %c0_i32 = arith.constant 0 : i32
    %2 = arith.minsi %1, %c0_i32 : i32
    %c0_i32_0 = arith.constant 0 : i32
    %c0_i32_1 = arith.constant 0 : i32
    return %2, %c0_i32_0 : i32, i32
  }
  func.func @transform_2(%arg0: i32, %arg1: i32) -> (i32, i32, i32) {
    %c0_i32 = arith.constant 0 : i32
    %c0_i32_0 = arith.constant 0 : i32
    %c0_i32_1 = arith.constant 0 : i32
    return %arg0, %c0_i32, %c0_i32_0 : i32, i32, i32
  }
}

</mosaic_0001>

<llo_original>
// kernel: tpu_custom_call.1
$region0: #{tpu_custom_call.1}
  #allocation0 [shape = 'u32[]', space=smem, size = 0x4, offset = 0x4, fixed_abs, tag = 'smem constant byte address 0x4 - core index']
  #allocation1 [shape = 'u32[72,128]{1,0:T(1,128)}', space=vmem, size = 0x9000, scoped, tag = 'internal scratch']
  #allocation2 [shape = 'f32[8,1]{1,0:T(8,128)}', space=vmem, size = 0x1000, scoped, tag = 'scratch operand']
  %s0 = inlined_call_operand.vmem [shape: f32[8,16], index: 0, kind: input, shape index: {}]
  %s1 = inlined_call_operand.vmem [shape: s32[8,1], index: 1, kind: input, shape index: {}]
  %s2 = inlined_call_operand.hbm [shape: f32[1,8,128], index: 2, kind: output, shape index: {}]
  %s3 = sld [smem:[#allocation0]]
  $region26: #{tpu_custom_call.1} parent=0
    _
  %s5 = ssub.s32 1, %s3
  %s6 = scalar_select 0, %s5, %s3
  $region1: #{tpu_custom_call.1} parent=0
    #allocation3 [shape = 'u8[4096]{0}', space=vmem, size = 0x1000, scoped, tag = 'output window, operand 0, single buffered']
    #allocation4 [shape = 's32[1]{0}', space=sflag, size = 0x4, scoped, tag = 'scoped memory for tpu_custom_call.1']
    %7 = vsyncpa [#allocation4], 0
    // Predicated region
    $region2: #{tpu_custom_call.1} parent=1 // pred_check
      _
    $region3: #{tpu_custom_call.1} parent=1 // pred_check_branch
      %9 = sbr.rel (0) target = $region5
    $region4: #{tpu_custom_call.1} parent=1 // pred_region
      %s10 = sadd.s32 0, 0
      %p11 = scmp.lt.s32.totalorder %s10, 0
      %s12 = scalar_select %p11, %s10, 0
      %p13 = scmp.lt.s32.totalorder %s12, 0
      %s14 = scalar_select %p13, %s12, 0
      %s15 = smul.addr %s14, 8
      %s16 = scalar_lea.vmem %s0, %s15
      %s17 = sadd.s32 0, 0
      %p18 = scmp.lt.s32.totalorder %s17, 0
      %s19 = scalar_select %p18, %s17, 0
    $region5: #{tpu_custom_call.1} parent=1 // pred_fallthru
      _
    // Predicated region
    $region6: #{tpu_custom_call.1} parent=1 // pred_check
      _
    $region7: #{tpu_custom_call.1} parent=1 // pred_check_branch
      %21 = sbr.rel (0) target = $region9
    $region8: #{tpu_custom_call.1} parent=1 // pred_region
      %s22 = sadd.s32 0, 0
      %p23 = scmp.lt.s32.totalorder %s22, 0
      %s24 = scalar_select %p23, %s22, 0
      %p25 = scmp.lt.s32.totalorder %s24, 0
      %s26 = scalar_select %p25, %s24, 0
      %s27 = smul.addr %s26, 8
      %s28 = scalar_lea.vmem %s1, %s27
      %s29 = sadd.s32 0, 0
      %p30 = scmp.lt.s32.totalorder %s29, 0
      %s31 = scalar_select %p30, %s29, 0
    $region9: #{tpu_custom_call.1} parent=1 // pred_fallthru
      _
    %s32 = sadd.s32 0, 0
    %p33 = scmp.lt.s32.totalorder %s32, 0
    %s34 = scalar_select %p33, %s32, 0
    %p35 = scmp.lt.s32.totalorder %s34, 0
    %s36 = scalar_select %p35, %s34, 0
    %s37 = smul.addr %s36, 8
    %s38 = scalar_lea.vmem %s0, %s37
    %s39 = sadd.s32 0, 0
    %p40 = scmp.lt.s32.totalorder %s39, 0
    %s41 = scalar_select %p40, %s39, 0
    %p42 = scmp.lt.s32.totalorder %s41, 0
    %s43 = scalar_select %p42, %s41, 0
    %s44 = smul.addr %s43, 8
    %s45 = scalar_lea.vmem %s1, %s44
    %s46 = sadd.s32 0, 0
    %p47 = scmp.lt.s32.totalorder %s46, 0
    %s48 = scalar_select %p47, %s46, 0
    %p49 = scmp.lt.s32.totalorder %s48, 0
    %s50 = scalar_select %p49, %s48, 0
    %s51 = smul.addr %s50, 8
    %s52 = scalar_lea.vmem %s0, %s51
    %s53 = sadd.s32 0, 0
    %p54 = scmp.lt.s32.totalorder %s53, 0
    %s55 = scalar_select %p54, %s53, 0
    %s56 = sadd.s32 0, 0
    %p57 = scmp.lt.s32.totalorder %s56, 0
    %s58 = scalar_select %p57, %s56, 0
    %p59 = scmp.lt.s32.totalorder %s58, 0
    %s60 = scalar_select %p59, %s58, 0
    %s61 = smul.addr %s60, 8
    %s62 = scalar_lea.vmem %s1, %s61
    %s63 = sadd.s32 0, 0
    %p64 = scmp.lt.s32.totalorder %s63, 0
    %s65 = scalar_select %p64, %s63, 0
    %p66 = scmp.eq.s32.totalorder 0, 0
    // Predicated region
    $region10: #{tpu_custom_call.1} parent=1 // pred_check
      %p67 = pneg %p66
    $region11: #{tpu_custom_call.1} parent=1 // pred_check_branch
      %69 = sbr.rel (%p67) target = $region13
    $region12: #{tpu_custom_call.1} parent=1 // pred_region
      %vm70 = vcmask 7168
      %71 = vst.msk [vmem:[#allocation2] sm:$0xff] %vm70, 0.0
    $region13: #{tpu_custom_call.1} parent=1 // pred_fallthru
      _
    %v72 = vld [vmem:[%s52] sm:$0xff]
    %v73 = vld [vmem:[%s62] sm:$0xff]
    %vm74 = vcmask 130048
    %v75 = vsel %vm74, %v72, -inf
    %76 = vmax.xlane.f32.xlu0 %v75
    %v77 = vpop.xlane.xlu0 %76
    %v78 = vsub.f32 %v72, %v77
    %v79 = vmul.f32 %v78, 1.442695
    %v80 = vpow.pop %v79
    %v81 = vsel %vm74, %v80, 0.0
    %82 = vadd.xlane.f32.xlu0 %v81
    %v83 = vpop.xlane.xlu0 %82
    %v84 = vlog2.pop %v83
    %v85 = vmul.f32 %v84, 0.6931472
    %v86 = vadd.f32 %v77, %v85
    %v87 = vlaneseq
    %v88 = vand.u32 %v87, 127
    %89 = vset.pattern.permute.xlu0 0
    %90 = vperm.xlu0 %89, %v73
    %v91 = vpop.permute.xlu0 %90
    %vm92 = vcmp.eq.s32.totalorder %v88, %v91
    %v93 = vsel %vm92, %v72, 0.0
    %v94 = vsel %vm74, %v93, 0.0
    %95 = vadd.xlane.f32.xlu0 %v94
    %v96 = vpop.xlane.xlu0 %95
    %v97 = vsub.f32 %v86, %v96
    %v98 = vsub.f32 0.0, %v97
    %v99 = vmul.f32 %v98, 1.442695
    %v100 = vpow.pop %v99
    %v101 = vsub.f32 1.0, %v100
    %v102 = vmul.f32 %v101, %v101
    %v103 = vmul.f32 %v102, %v97
    %v104 = vlaneseq
    %v105 = vshrl.u32 %v104, 7
    %s106 = sadd.s32 0, 0
    %s107 = smul.u32 %s106, 8
    %v108 = vstv %s107
    %v109 = vadd.s32 %v108, %v105
    %vm110 = vcmp.lt.s32.totalorder %v109, 8
    %v111 = vld [vmem:[#allocation2] sm:$0xff]
    %v112 = vsel %vm110, %v103, 0.0
    %v113 = vadd.f32 %v111, %v112
    %vm114 = vcmask 7168
    %115 = vst.msk [vmem:[#allocation2] sm:$0xff] %vm114, %v113
    // Predicated region
    $region14: #{tpu_custom_call.1} parent=1 // pred_check
      %p116 = pneg %p66
    $region15: #{tpu_custom_call.1} parent=1 // pred_check_branch
      %118 = sbr.rel (%p116) target = $region17
    $region16: #{tpu_custom_call.1} parent=1 // pred_region
      %v119 = vld [vmem:[#allocation2] sm:$0xff]
      %v120 = vsel %vm114, %v119, 0.0
      %121 = vadd.xlane.f32.xlu0 %v120
      %v122 = vpop.xlane.xlu0 %121
      %v123 = vrot.slane %v122, 4
      %v124 = vadd.f32 %v122, %v123
      %v125 = vrot.slane %v124, 2
      %v126 = vadd.f32 %v124, %v125
      %v127 = vrot.slane %v126, 1
      %v128 = vadd.f32 %v126, %v127
      %s129 = vtos %v128
      %v130 = vstv %s129
      %v131 = vadd.f32 %v130, 0.0
      %132 = vst [vmem:[#allocation3] sm:$0xff] %v131
    $region17: #{tpu_custom_call.1} parent=1 // pred_fallthru
      _
    // Predicated region
    $region18: #{tpu_custom_call.1} parent=1 // pred_check
      _
    $region19: #{tpu_custom_call.1} parent=1 // pred_check_branch
      %134 = sbr.rel (0) target = $region21
    $region20: #{tpu_custom_call.1} parent=1 // pred_region
      %136 = vsyncadd [#allocation4], 0
      %s138 = sshll.u32 [#allocation3], 4
      %s139 = int_to_ptr.vmem [resolvable:$true] %s138
      %s140 = sshll.u32 %s2, 4
      %s141 = int_to_ptr.hbm [resolvable:$true] %s140
      %143 = dma.vmem_to_hbm [thread:$0]  %s139, 128, %s141, [#allocation4]
    $region21: #{tpu_custom_call.1} parent=1 // pred_fallthru
      _
    // Predicated region
    $region22: #{tpu_custom_call.1} parent=1 // pred_check
      _
    $region23: #{tpu_custom_call.1} parent=1 // pred_check_branch
      %145 = sbr.rel (0) target = $region25
    $region24: #{tpu_custom_call.1} parent=1 // pred_region
      %147 = dma.done [#allocation4], 128
    $region25: #{tpu_custom_call.1} parent=1 // pred_fallthru
      _
    %148 = vsyncpa [#allocation4], 1

</llo_original>
